<compile_context>
chip_gen: v6e
topology: v6e:2x2x1
jax: 0.10.0
libtpu: 0.0.40
codegen_flags: <defaults>
</compile_context>

<pallas_src>
import functools

import jax
import jax.numpy as jnp
from jax.experimental import pallas as pl
from jax.experimental.pallas import tpu as pltpu

EPS = 1e-8


def _round_up(v, m):
    return (v + m - 1) // m * m


# ---------------------------------------------------------------------------
# Pallas kernel: smoothing + per-token activation fake-quant + tiled matmul + bias
# ---------------------------------------------------------------------------
def _smoothquant_linear_kernel(x_ref, inv_scale_ref, w_ref, b_ref, o_ref, xq_ref, *, n_bits):
    """Produces one (tm, tn) output tile.

    grid = (M_pad // tm, N_pad // tn); axis 0 = row tiles (parallel), axis 1 = output
    tiles (arbitrary, sequential per row tile).  The fake-quantized activation tile is
    computed once per row tile (j == 0) and cached in VMEM scratch for the rest of the
    N sweep, so the quant prologue is not redone per output tile.
    """
    q_max = float(2 ** (n_bits - 1) - 1)
    q_min = -q_max - 1.0

    @pl.when(pl.program_id(1) == 0)
    def _():
        x = x_ref[...].astype(jnp.float32)                       # (tm, K)
        sx = x * inv_scale_ref[...]                              # smooth: x * (1/scale)
        # per-token (per-row) dynamic symmetric fake quantization
        a_absmax = jnp.maximum(jnp.max(jnp.abs(sx), axis=-1, keepdims=True), EPS)  # (tm,1)
        inv_a_scale = q_max / a_absmax                           # only a (tm,1) divide
        a_scale = a_absmax * (1.0 / q_max)
        x_q = jnp.clip(jnp.round(sx * inv_a_scale), q_min, q_max) * a_scale
        xq_ref[...] = x_q.astype(xq_ref.dtype)                   # cache in MXU dtype

    # (tm, K) . (tn, K)^T without materializing a transpose: contract K with K on the MXU.
    out = jax.lax.dot_general(
        xq_ref[...], w_ref[...],
        dimension_numbers=(((1,), (1,)), ((), ())),
        preferred_element_type=jnp.float32,
    )
    out = out + b_ref[...]                                       # (1, tn) broadcast
    o_ref[...] = out.astype(o_ref.dtype)


def smoothquant_linear_forward(x, inv_scale, w_q, bias, *, n_bits, tm=256, tn=256):
    """x: [M, K]; inv_scale: [K]; w_q: [N, K] (MXU dtype); bias: [N] -> [M, N] in x.dtype."""
    M, K = x.shape
    N = w_q.shape[0]

    # Tile alignment: sublane multiple of 8, lane-dense output tiles (multiple of 128).
    tm = _round_up(max(tm, 8), 8)
    tn = _round_up(max(tn, 128), 128)
    tm_eff = min(tm, _round_up(M, 8))
    tn_eff = min(tn, _round_up(N, 128))
    M_pad = _round_up(M, tm_eff)
    N_pad = _round_up(N, tn_eff)

    x_p = x if M_pad == M else jnp.pad(x, ((0, M_pad - M), (0, 0)))
    w_p = w_q if N_pad == N else jnp.pad(w_q, ((0, N_pad - N), (0, 0)))
    b_p = bias if N_pad == N else jnp.pad(bias, (0, N_pad - N))

    inv_scale2d = inv_scale.reshape(1, K).astype(jnp.float32)
    bias2d = b_p.reshape(1, N_pad).astype(jnp.float32)

    grid = (M_pad // tm_eff, N_pad // tn_eff)

    # Scoped VMEM sized from the tile working set (double-buffered ins/outs + xq scratch),
    # capped at 64 MiB so it is valid on v7x as well as v5e/v6e.
    x_bytes = jnp.dtype(x.dtype).itemsize
    w_bytes = jnp.dtype(w_q.dtype).itemsize
    working = (
        2 * (tm_eff * K * x_bytes
             + tn_eff * K * w_bytes
             + tm_eff * tn_eff * x_bytes
             + K * 4 + tn_eff * 4)
        + tm_eff * K * w_bytes
    )
    vmem_limit = int(min(max(2 * working, 32 * 1024 * 1024), 64 * 1024 * 1024))

    kernel = functools.partial(_smoothquant_linear_kernel, n_bits=n_bits)

    out = pl.pallas_call(
        kernel,
        out_shape=jax.ShapeDtypeStruct((M_pad, N_pad), x.dtype),
        grid_spec=pltpu.PrefetchScalarGridSpec(
            num_scalar_prefetch=0,
            grid=grid,
            in_specs=[
                pl.BlockSpec((tm_eff, K), lambda i, j: (i, 0)),    # activation row tile
                pl.BlockSpec((1, K), lambda i, j: (0, 0)),         # 1/scale (resident)
                pl.BlockSpec((tn_eff, K), lambda i, j: (j, 0)),    # weight tile (pipelined)
                pl.BlockSpec((1, tn_eff), lambda i, j: (0, j)),    # bias tile
            ],
            out_specs=pl.BlockSpec((tm_eff, tn_eff), lambda i, j: (i, j)),
            scratch_shapes=[pltpu.VMEM((tm_eff, K), w_q.dtype)],   # cached x_q (MXU dtype)
        ),
        compiler_params=pltpu.CompilerParams(
            # Axis 1 stays sequential per row tile so the j==0 activation-quant cache is
            # valid; axis 0 is free to be sharded across cores.
            dimension_semantics=("parallel", "arbitrary"),
            vmem_limit_bytes=vmem_limit,
        ),
    )(x_p, inv_scale2d, w_p, bias2d)

    if M_pad != M or N_pad != N:
        out = out[:M, :N]
    return out


# ---------------------------------------------------------------------------
# Init-time parameter setup (plain JAX glue, mirrors SmoothQuantLinear.__init__)
# ---------------------------------------------------------------------------
def compute_smooth_scale(weight, act_scale, alpha):
    # weight: [out, in], act_scale: [in]
    w_abs_max = jnp.clip(jnp.max(jnp.abs(weight), axis=0), EPS, None)       # [in]
    scale = jnp.clip(
        jnp.power(act_scale, alpha) / jnp.power(w_abs_max, 1.0 - alpha), EPS, None
    )
    return scale                                                             # [in]


def quantize_weight_per_channel(w_smoothed, n_bits):
    # symmetric per-output-channel fake quantization (init-time, done once)
    q_max = float(2 ** (n_bits - 1) - 1)
    w_absmax = jnp.clip(jnp.max(jnp.abs(w_smoothed), axis=1, keepdims=True), EPS, None)
    w_scale = w_absmax / q_max
    return jnp.clip(jnp.round(w_smoothed / w_scale), -q_max - 1.0, q_max) * w_scale


class SmoothQuantLinearPallas:
    def __init__(self, weight, bias, act_scale, n_bits, alpha=0.5, mma_dtype=jnp.bfloat16):
        # mma_dtype: operand dtype fed to the MXU.  bf16 is essentially free on top of the
        # n_bits fake quantization and doubles MXU rate / halves weight VMEM+HBM traffic;
        # pass jnp.float32 for bit-closer parity with a full-precision reference.
        self.n_bits = int(n_bits)
        self.scale = compute_smooth_scale(weight, act_scale, alpha)          # [in]
        self.inv_scale = (1.0 / self.scale).astype(jnp.float32)              # [in]
        w_smoothed = weight * self.scale[None, :]                            # [out, in]
        self.w_q = quantize_weight_per_channel(w_smoothed, self.n_bits).astype(mma_dtype)
        self.bias = bias.astype(jnp.float32)                                 # [out]

    def __call__(self, x, *, tm=256, tn=256):
        # x: [..., in_features]
        lead = x.shape[:-1]
        K = x.shape[-1]
        x2d = x.reshape(-1, K)
        out2d = smoothquant_linear_forward(
            x2d, self.inv_scale, self.w_q, self.bias, n_bits=self.n_bits, tm=tm, tn=tn
        )
        return out2d.reshape(*lead, self.w_q.shape[0])


# ---------------------------------------------------------------------------
# Pure-JAX reference for sanity checking (mirrors the kernel's math, incl. MXU dtype)
# ---------------------------------------------------------------------------
def reference_forward(x2d, inv_scale, w_q, bias, n_bits):
    q_max = float(2 ** (n_bits - 1) - 1)
    sx = x2d.astype(jnp.float32) * inv_scale.astype(jnp.float32)
    a_absmax = jnp.maximum(jnp.max(jnp.abs(sx), axis=-1, keepdims=True), EPS)
    inv_a_scale = q_max / a_absmax
    a_scale = a_absmax * (1.0 / q_max)
    x_q = jnp.clip(jnp.round(sx * inv_a_scale), -q_max - 1.0, q_max) * a_scale
    x_q = x_q.astype(w_q.dtype).astype(jnp.float32)   # same MXU-operand rounding as the kernel
    return x_q @ w_q.astype(jnp.float32).T + bias.astype(jnp.float32)


if __name__ == "__main__":
    key = jax.random.PRNGKey(0)

    def check(batch, seq, in_features, out_features, n_bits, alpha, tm, tn, key):
        k_w, k_b, k_a, k_x = jax.random.split(key, 4)
        weight = jax.random.normal(k_w, (out_features, in_features), jnp.float32) * 0.1
        bias = jax.random.normal(k_b, (out_features,), jnp.float32) * 0.05
        act_scale = jnp.abs(jax.random.normal(k_a, (in_features,), jnp.float32)) + 0.1
        x = jax.random.normal(k_x, (batch, seq, in_features), jnp.float32)

        mod = SmoothQuantLinearPallas(weight, bias, act_scale, n_bits, alpha)
        out = jax.block_until_ready(mod(x, tm=tm, tn=tn))

        ref = reference_forward(
            x.reshape(-1, in_features), mod.inv_scale, mod.w_q, mod.bias, n_bits
        ).reshape(batch, seq, out_features)

        assert out.shape == (batch, seq, out_features)
        err = float(jnp.max(jnp.abs(out - ref)))
        assert jnp.allclose(out, ref, atol=2e-3, rtol=2e-3), f"mismatch vs reference (max abs err {err})"

    k1, k2 = jax.random.split(key)
    # Small case exercising M/N padding (M=16 < tm, N=64 padded to a lane-dense 128 tile).
    check(batch=2, seq=8, in_features=32, out_features=64, n_bits=8, alpha=0.5,
          tm=256, tn=256, key=k1)
    # Multi-tile case exercising the 2-D grid, padding of a non-divisible M, and the
    # j==0 activation-quant cache (M=200 -> 4 row tiles, N=192 -> 2 output tiles of 128).
    check(batch=4, seq=50, in_features=64, out_features=192, n_bits=8, alpha=0.5,
          tm=64, tn=128, key=k2)

    print("KERNEL_OK")
</pallas_src>

<mosaic_0001>
module attributes {stable_mosaic.version = 11 : i64} {
  func.func @_smoothquant_linear_kernel(%arg0: i32, %arg1: i32, %arg2: memref<16x32xf32, #tpu.memory_space<vmem>>, %arg3: memref<1x32xf32, #tpu.memory_space<vmem>>, %arg4: memref<128x32xbf16, #tpu.memory_space<vmem>>, %arg5: memref<1x128xf32, #tpu.memory_space<vmem>>, %arg6: memref<16x128xf32, #tpu.memory_space<vmem>>, %arg7: memref<16x32xbf16, #tpu.memory_space<vmem>>) attributes {dimension_semantics = [#tpu.dimension_semantics<parallel>, #tpu.dimension_semantics<arbitrary>], iteration_bounds = array<i64: 1, 1>, scalar_prefetch = 0 : i64, scratch_operands = 1 : i64, tpu.core_type = #tpu.core_type<tc>, window_params = [{transform_indices = @transform_0, window_bounds = array<i64: 16, 32>}, {pipeline_mode = #tpu.pipeline_mode<synchronous>, transform_indices = @transform_1, window_bounds = array<i64: 1, 32>}, {transform_indices = @transform_2, window_bounds = array<i64: 128, 32>}, {transform_indices = @transform_3, window_bounds = array<i64: 1, 128>}, {transform_indices = @transform_4, window_bounds = array<i64: 16, 128>}]} {
    %c0_i32 = arith.constant 0 : i32
    %0 = arith.cmpi eq, %arg1, %c0_i32 : i32
    %1 = arith.extui %0 : i1 to i32
    %c0_i32_0 = arith.constant 0 : i32
    %2 = arith.cmpi ne, %1, %c0_i32_0 : i32
    scf.if %2 {
      %c0_8 = arith.constant 0 : index
      %c0_9 = arith.constant 0 : index
      %10 = vector.load %arg2[%c0_8, %c0_9] : memref<16x32xf32, #tpu.memory_space<vmem>>, vector<16x32xf32>
      %c0_10 = arith.constant 0 : index
      %c0_11 = arith.constant 0 : index
      %11 = vector.load %arg3[%c0_10, %c0_11] : memref<1x32xf32, #tpu.memory_space<vmem>>, vector<1x32xf32>
      %12 = vector.broadcast %11 : vector<1x32xf32> to vector<16x32xf32>
      %13 = arith.mulf %10, %12 : vector<16x32xf32>
      %14 = math.absf %13 : vector<16x32xf32>
      %cst_12 = arith.constant dense<0xFF800000> : vector<16xf32>
      %15 = vector.multi_reduction <maximumf>, %14, %cst_12 [1] : vector<16x32xf32> to vector<16xf32>
      %16 = vector.shape_cast %15 : vector<16xf32> to vector<16x1xf32>
      %cst_13 = arith.constant 9.99999993E-9 : f32
      %17 = vector.broadcast %cst_13 : f32 to vector<16x1xf32>
      %18 = arith.maximumf %16, %17 : vector<16x1xf32>
      %cst_14 = arith.constant 1.270000e+02 : f32
      %19 = vector.broadcast %cst_14 : f32 to vector<16x1xf32>
      %20 = arith.divf %19, %18 : vector<16x1xf32>
      %cst_15 = arith.constant 0.00787401571 : f32
      %21 = vector.broadcast %cst_15 : f32 to vector<16x1xf32>
      %22 = arith.mulf %18, %21 : vector<16x1xf32>
      %23 = vector.broadcast %20 : vector<16x1xf32> to vector<16x32xf32>
      %24 = arith.mulf %13, %23 : vector<16x32xf32>
      %25 = math.roundeven %24 : vector<16x32xf32>
      %cst_16 = arith.constant -1.280000e+02 : f32
      %cst_17 = arith.constant 1.270000e+02 : f32
      %26 = vector.broadcast %cst_16 : f32 to vector<16x32xf32>
      %27 = arith.maximumf %26, %25 : vector<16x32xf32>
      %28 = vector.broadcast %cst_17 : f32 to vector<16x32xf32>
      %29 = arith.minimumf %28, %27 : vector<16x32xf32>
      %30 = vector.broadcast %22 : vector<16x1xf32> to vector<16x32xf32>
      %31 = arith.mulf %29, %30 : vector<16x32xf32>
      %32 = arith.truncf %31 : vector<16x32xf32> to vector<16x32xbf16>
      %c0_18 = arith.constant 0 : index
      %c0_19 = arith.constant 0 : index
      %33 = vector.load %arg7[%c0_18, %c0_19] : memref<16x32xbf16, #tpu.memory_space<vmem>>, vector<16x32xbf16>
      tpu.vector_store %arg7[%c0_18, %c0_19], %32 {strides = array<i32>} : memref<16x32xbf16, #tpu.memory_space<vmem>>, vector<16x32xbf16>,
    } else {
    }
    %c0 = arith.constant 0 : index
    %c0_1 = arith.constant 0 : index
    %3 = vector.load %arg7[%c0, %c0_1] : memref<16x32xbf16, #tpu.memory_space<vmem>>, vector<16x32xbf16>
    %c0_2 = arith.constant 0 : index
    %c0_3 = arith.constant 0 : index
    %4 = vector.load %arg4[%c0_2, %c0_3] : memref<128x32xbf16, #tpu.memory_space<vmem>>, vector<128x32xbf16>
    %cst = arith.constant dense<0.000000e+00> : vector<16x128xf32>
    %5 = tpu.matmul %3, %4, %cst {dimension_numbers = #tpu.dot_dimension_numbers<[1], [1], [0], [0], [0, 0, 1, 0], [], []>} : vector<16x32xbf16>, vector<128x32xbf16>, vector<16x128xf32> -> vector<16x128xf32>
    %c0_4 = arith.constant 0 : index
    %c0_5 = arith.constant 0 : index
    %6 = vector.load %arg5[%c0_4, %c0_5] : memref<1x128xf32, #tpu.memory_space<vmem>>, vector<1x128xf32>
    %7 = vector.broadcast %6 : vector<1x128xf32> to vector<16x128xf32>
    %8 = arith.addf %5, %7 : vector<16x128xf32>
    %c0_6 = arith.constant 0 : index
    %c0_7 = arith.constant 0 : index
    %9 = vector.load %arg6[%c0_6, %c0_7] : memref<16x128xf32, #tpu.memory_space<vmem>>, vector<16x128xf32>
    tpu.vector_store %arg6[%c0_6, %c0_7], %8 {strides = array<i32>} : memref<16x128xf32, #tpu.memory_space<vmem>>, vector<16x128xf32>,
    return
  }
  func.func @transform_0(%arg0: i32, %arg1: i32) -> (i32, i32) {
    %c0_i32 = arith.constant 0 : i32
    %c0_i32_0 = arith.constant 0 : i32
    return %arg0, %c0_i32 : i32, i32
  }
  func.func @transform_1(%arg0: i32, %arg1: i32) -> (i32, i32) {
    %c0_i32 = arith.constant 0 : i32
    %c0_i32_0 = arith.constant 0 : i32
    %c0_i32_1 = arith.constant 0 : i32
    return %c0_i32, %c0_i32_0 : i32, i32
  }
  func.func @transform_2(%arg0: i32, %arg1: i32) -> (i32, i32) {
    %c0_i32 = arith.constant 0 : i32
    %c0_i32_0 = arith.constant 0 : i32
    return %arg1, %c0_i32 : i32, i32
  }
  func.func @transform_3(%arg0: i32, %arg1: i32) -> (i32, i32) {
    %c0_i32 = arith.constant 0 : i32
    %c0_i32_0 = arith.constant 0 : i32
    return %c0_i32, %arg1 : i32, i32
  }
  func.func @transform_4(%arg0: i32, %arg1: i32) -> (i32, i32) {
    %c0_i32 = arith.constant 0 : i32
    return %arg0, %arg1 : i32, i32
  }
}

</mosaic_0001>

<llo_original>
// kernel: tpu_custom_call.1
$region0: #{tpu_custom_call.1}
  #allocation0 [shape = 'u32[]', space=smem, size = 0x4, offset = 0x4, fixed_abs, tag = 'smem constant byte address 0x4 - core index']
  #allocation1 [shape = 'u32[144,128]{1,0:T(1,128)}', space=vmem, size = 0x12000, scoped, tag = 'internal scratch']
  #allocation2 [shape = 'bf16[16,32]{1,0:T(8,128)(2,1)}', space=vmem, size = 0x1000, scoped, tag = 'scratch operand']
  %s0 = inlined_call_operand.vmem [shape: f32[16,32], index: 0, kind: input, shape index: {}]
  %s1 = inlined_call_operand.vmem [shape: f32[1,32], index: 1, kind: input, shape index: {}]
  %s2 = inlined_call_operand.vmem [shape: bf16[128,32], index: 2, kind: input, shape index: {}]
  %s3 = inlined_call_operand.vmem [shape: f32[1,128], index: 3, kind: input, shape index: {}]
  %s4 = inlined_call_operand.hbm [shape: f32[16,128], index: 4, kind: output, shape index: {}]
  %s5 = sld [smem:[#allocation0]]
  $region30: #{tpu_custom_call.1} parent=0
    _
  %s7 = ssub.s32 1, %s5
  %s8 = scalar_select 0, %s7, %s5
  $region1: #{tpu_custom_call.1} parent=0
    #allocation3 [shape = 'u8[8192]{0}', space=vmem, size = 0x2000, scoped, tag = 'output window, operand 0, single buffered']
    #allocation4 [shape = 's32[1]{0}', space=sflag, size = 0x4, scoped, tag = 'scoped memory for tpu_custom_call.1']
    %9 = vsyncpa [#allocation4], 0
    // Predicated region
    $region2: #{tpu_custom_call.1} parent=1 // pred_check
      _
    $region3: #{tpu_custom_call.1} parent=1 // pred_check_branch
      %11 = sbr.rel (0) target = $region5
    $region4: #{tpu_custom_call.1} parent=1 // pred_region
      _
    $region5: #{tpu_custom_call.1} parent=1 // pred_fallthru
      _
    // Predicated region
    $region6: #{tpu_custom_call.1} parent=1 // pred_check
      _
    $region7: #{tpu_custom_call.1} parent=1 // pred_check_branch
      %13 = sbr.rel (0) target = $region9
    $region8: #{tpu_custom_call.1} parent=1 // pred_region
      _
    $region9: #{tpu_custom_call.1} parent=1 // pred_fallthru
      _
    // Predicated region
    $region10: #{tpu_custom_call.1} parent=1 // pred_check
      _
    $region11: #{tpu_custom_call.1} parent=1 // pred_check_branch
      %15 = sbr.rel (0) target = $region13
    $region12: #{tpu_custom_call.1} parent=1 // pred_region
      _
    $region13: #{tpu_custom_call.1} parent=1 // pred_fallthru
      _
    // Predicated region
    $region14: #{tpu_custom_call.1} parent=1 // pred_check
      _
    $region15: #{tpu_custom_call.1} parent=1 // pred_check_branch
      %17 = sbr.rel (0) target = $region17
    $region16: #{tpu_custom_call.1} parent=1 // pred_region
      _
    $region17: #{tpu_custom_call.1} parent=1 // pred_fallthru
      _
    %p19 = scmp.eq.s32.totalorder 0, 0
    // Predicated region
    $region18: #{tpu_custom_call.1} parent=1 // pred_check
      %p20 = pneg %p19
    $region19: #{tpu_custom_call.1} parent=1 // pred_check_branch
      %22 = sbr.rel (%p20) target = $region21
    $region20: #{tpu_custom_call.1} parent=1 // pred_region
      %v23 = vld [vmem:[%s0] sm:$0xff]
      %v24 = vld [vmem:[%s0 + $0x8] sm:$0xff]
      %v25 = vld [vmem:[%s1] sm:$0x1]
      %v27 = vlaneseq
      %v28 = vshrl.u32 %v27, 7
      %v29 = vsub.s32 0, %v28
      %v30 = vrot.slane %v25, %v29
      %v32 = vmul.f32 %v23, %v30
      %v33 = vmul.f32 %v24, %v30
      %v34 = vand.u32 2147483647, %v32
      %v35 = vand.u32 2147483647, %v33
      %vm36 = vcmask 261120
      %v37 = vsel %vm36, %v34, -inf
      %38 = vmax.xlane.f32.xlu0 %v37
      %v39 = vpop.xlane.xlu0 %38
      %v40 = vsel %vm36, %v35, -inf
      %41 = vmax.xlane.f32.xlu0 %v40
      %v42 = vpop.xlane.xlu0 %41
      %v43 = vmax.f32 %v39, 1e-08
      %v44 = vmax.f32 %v42, 1e-08
      %v45 = vrcp.pop %v43
      %v46 = vmul.f32 127.0, %v45
      %v47 = vrcp.pop %v44
      %v48 = vmul.f32 127.0, %v47
      %v49 = vmul.f32 %v43, 0.007874016
      %v50 = vmul.f32 %v44, 0.007874016
      %v51 = vmul.f32 %v32, %v46
      %v52 = vmul.f32 %v33, %v48
      %v53 = vround.ne.pseudo %v51
      %v54 = vround.ne.pseudo %v52
      %v55 = vmax.f32 %v53, -128.0
      %v56 = vmax.f32 %v54, -128.0
      %v57 = vmin.f32 %v55, 127.0
      %v58 = vmin.f32 %v56, 127.0
      %v59 = vmul.f32 %v57, %v49
      %v60 = vmul.f32 %v58, %v50
      %v61 = vpack.c.bf16 %v60, %v59
      %v63 = vunpack.c.l.b16 %v61
      %v64 = vunpack.c.h.b16 %v61
      %v65 = vpack.c.b16 %v63, %v63
      %v66 = vpack.c.b16 %v64, %v64
      %vm69 = vcmask 257024
      %70 = vst.msk [vmem:[#allocation2] sm:$0xf] %vm69, %v65
      %71 = vst.msk [vmem:[#allocation2 + $0x4] sm:$0xf] %vm69, %v66
    $region21: #{tpu_custom_call.1} parent=1 // pred_fallthru
      _
    %v72 = vld [vmem:[#allocation2] sm:$0xf]
    %v73 = vld [vmem:[#allocation2 + $0x4] sm:$0xf]
    %v74 = vld [vmem:[%s2] sm:$0xf]
    %v75 = vld [vmem:[%s2 + $0x4] sm:$0xf]
    %v76 = vld [vmem:[%s2 + $0x8] sm:$0xf]
    %v77 = vld [vmem:[%s2 + $0xc] sm:$0xf]
    %v78 = vld [vmem:[%s2 + $0x10] sm:$0xf]
    %v79 = vld [vmem:[%s2 + $0x14] sm:$0xf]
    %v80 = vld [vmem:[%s2 + $0x18] sm:$0xf]
    %v81 = vld [vmem:[%s2 + $0x1c] sm:$0xf]
    %v82 = vld [vmem:[%s2 + $0x20] sm:$0xf]
    %v83 = vld [vmem:[%s2 + $0x24] sm:$0xf]
    %v84 = vld [vmem:[%s2 + $0x28] sm:$0xf]
    %v85 = vld [vmem:[%s2 + $0x2c] sm:$0xf]
    %v86 = vld [vmem:[%s2 + $0x30] sm:$0xf]
    %v87 = vld [vmem:[%s2 + $0x34] sm:$0xf]
    %v88 = vld [vmem:[%s2 + $0x38] sm:$0xf]
    %v89 = vld [vmem:[%s2 + $0x3c] sm:$0xf]
    %v90 = vld [vmem:[%s3] sm:$0x1]
    %v92 = vlaneseq
    %v93 = vshrl.u32 %v92, 7
    %v94 = vsub.s32 0, %v93
    %v95 = vrot.slane %v90, %v94
    %v99 = vunpack.c.l.b16 %v72
    %v100 = vunpack.c.l.b16 %v73
    %v101 = vpack.c.b16 %v100, %v99
    %v118 = vunpack.c.l.b16 %v74
    %v119 = vunpack.c.l.b16 %v75
    %v120 = vunpack.c.l.b16 %v76
    %v121 = vunpack.c.l.b16 %v77
    %v122 = vunpack.c.l.b16 %v78
    %v123 = vunpack.c.l.b16 %v79
    %v124 = vunpack.c.l.b16 %v80
    %v125 = vunpack.c.l.b16 %v81
    %v126 = vunpack.c.l.b16 %v82
    %v127 = vunpack.c.l.b16 %v83
    %v128 = vunpack.c.l.b16 %v84
    %v129 = vunpack.c.l.b16 %v85
    %v130 = vunpack.c.l.b16 %v86
    %v131 = vunpack.c.l.b16 %v87
    %v132 = vunpack.c.l.b16 %v88
    %v133 = vunpack.c.l.b16 %v89
    %v134 = vpack.c.b16 %v119, %v118
    %v135 = vpack.c.b16 %v121, %v120
    %v136 = vpack.c.b16 %v123, %v122
    %v137 = vpack.c.b16 %v125, %v124
    %v138 = vpack.c.b16 %v127, %v126
    %v139 = vpack.c.b16 %v129, %v128
    %v140 = vpack.c.b16 %v131, %v130
    %v141 = vpack.c.b16 %v133, %v132
    %vm142 = vcmask 261120
    %v144 = vsel %vm142, %v101, 0
    %v147 = vsel %vm142, %v134, 0
    %v150 = vsel %vm142, %v135, 0
    %v153 = vsel %vm142, %v136, 0
    %v156 = vsel %vm142, %v137, 0
    %v159 = vsel %vm142, %v138, 0
    %v162 = vsel %vm142, %v139, 0
    %v165 = vsel %vm142, %v140, 0
    %v168 = vsel %vm142, %v141, 0
    %170 = vmatprep.subr.bf16.mxu0 0
    %171 = vmatpush1.bf16.xpose.msra.mxu0 %v168
    %172 = vmatprep.subr.bf16.mxu0 0
    %173 = vmatpush1.bf16.xpose.msra.mxu0 %v165
    %174 = vmatprep.subr.bf16.mxu0 0
    %175 = vmatpush1.bf16.xpose.msra.mxu0 %v162
    %176 = vmatprep.subr.bf16.mxu0 0
    %177 = vmatpush1.bf16.xpose.msra.mxu0 %v159
    %178 = vmatprep.subr.bf16.mxu0 0
    %179 = vmatpush1.bf16.xpose.msra.mxu0 %v156
    %180 = vmatprep.subr.bf16.mxu0 0
    %181 = vmatpush1.bf16.xpose.msra.mxu0 %v153
    %182 = vmatprep.subr.bf16.mxu0 0
    %183 = vmatpush1.bf16.xpose.msra.mxu0 %v150
    %184 = vmatprep.subr.bf16.mxu0 0
    %185 = vmatpush1.bf16.xpose.msra.mxu0 %v147
    %186 = vmatprep.subr.bf16.mxu0 0
    %187 = vmatpush2.bf16.xpose.msra.mxu0 0
    %188 = vmatprep.subr.bf16.mxu0 0
    %189 = vmatpush2.bf16.xpose.msra.mxu0 0
    %190 = vmatprep.subr.bf16.mxu0 0
    %191 = vmatpush2.bf16.xpose.msra.mxu0 0
    %192 = vmatprep.subr.bf16.mxu0 0
    %193 = vmatpush2.bf16.xpose.msra.mxu0 0
    %194 = vmatprep.subr.bf16.mxu0 0
    %195 = vmatpush2.bf16.xpose.msra.mxu0 0
    %196 = vmatprep.subr.bf16.mxu0 0
    %197 = vmatpush2.bf16.xpose.msra.mxu0 0
    %198 = vmatprep.subr.bf16.mxu0 0
    %199 = vmatpush2.bf16.xpose.msra.mxu0 0
    %200 = vmatprep.subr.bf16.mxu0 0
    %201 = vmatpush2.bf16.xpose.msra.mxu0 0
    %202 = vmatprep.mubr.bf16.mxu0 0
    %203 = vmatmul.mubr.bf16.gmra.mxu0 %v144
    %v204 = vpop.f32.mrf.mxu0
    %v205 = vadd.f32 %v95, %v204
    %v206 = vpop.f32.mrf.mxu0
    %v207 = vpop.f32.mrf.mxu0
    %v208 = vadd.f32 %v95, %v207
    %v209 = vpop.f32.mrf.mxu0
    %210 = vdwg.mxu0
    %211 = vst [vmem:[#allocation3] sm:$0xff] %v205
    %212 = vst [vmem:[#allocation3 + $0x8] sm:$0xff] %v208
    // Predicated region
    $region22: #{tpu_custom_call.1} parent=1 // pred_check
      _
    $region23: #{tpu_custom_call.1} parent=1 // pred_check_branch
      %214 = sbr.rel (0) target = $region25
    $region24: #{tpu_custom_call.1} parent=1 // pred_region
      %s216 = ssub.s32 256, 256
      %217 = vsyncadd [#allocation4], %s216
      %s218 = sshll.u32 [#allocation3], 4
      %s219 = int_to_ptr.vmem [resolvable:$true] %s218
      %224 = dma.vmem_to_hbm [thread:$0]  %s219, 256, %s4, [#allocation4], 128, 128, 8
    $region25: #{tpu_custom_call.1} parent=1 // pred_fallthru
      _
    // Predicated region
    $region26: #{tpu_custom_call.1} parent=1 // pred_check
      _
    $region27: #{tpu_custom_call.1} parent=1 // pred_check_branch
      %226 = sbr.rel (0) target = $region29
    $region28: #{tpu_custom_call.1} parent=1 // pred_region
      %227 = dma.done [#allocation4], 256
    $region29: #{tpu_custom_call.1} parent=1 // pred_fallthru
      _
    %228 = vsyncpa [#allocation4], 1

</llo_original>
